<compile_context>
chip_gen: v7x
topology: tpu7x:2x2x1
jax: 0.10.0
libtpu: 0.0.40
codegen_flags: <defaults>
</compile_context>

<pallas_src>
import jax
import jax.numpy as jnp
from jax import lax
from jax.experimental import pallas as pl
from jax.experimental.pallas import tpu as pltpu

_LANE = 128


def _round_up(x, m):
    return ((x + m - 1) // m) * m


def _corr_kernel(a_ref, b_ref, o_ref):
    # a_ref: (1, HW_A, C)   feature_A rows, j = w_idx*H + h_idx (PyTorch transpose(2,3).view)
    # b_ref: (1, C, TN)     feature_B column tile, i = h_idx*W + w_idx (PyTorch view)
    # o_ref: (1, HW_A, TN)  o[j, i] = ReLU(corr[j, i]) / ||ReLU(corr[:, i])||_2
    a = a_ref[0]    # (HW_A, C)  -- LHS [M, K]
    bt = b_ref[0]   # (C, TN)    -- RHS [K, N]

    # Plain [M,K]@[K,N] on the MXU with f32 accumulation.
    m = jnp.dot(a, bt, preferred_element_type=jnp.float32)   # (HW_A, TN) f32
    m = jnp.maximum(m, 0.0)                                   # ReLU

    # featureL2Norm over the HW_A axis (dim 1 of the PyTorch output).  The full
    # HW_A axis is present in this block, so the per-column norm is exact.
    norm_sq = jnp.sum(m * m, axis=0, keepdims=True) + 1e-6    # (1, TN)
    o_ref[0] = (m * lax.rsqrt(norm_sq)).astype(o_ref.dtype)


def feature_correlation_3d(feature_A, feature_B, *, block_n=None,
                           compute_dtype=jnp.bfloat16):
    """FeatureCorrelation(shape='3D', normalization=True).

    feature_A, feature_B: (B, C, H, W) float32 (NCHW).
    Returns: (B, H*W, H, W) float32, matching PyTorch semantics.
    """
    b, c, h, w = feature_A.shape
    hw = h * w

    # --- glue: replicate PyTorch flattening conventions (cheap vs hw^2 output) ---
    # LHS (b, HW_A, C): j = w_idx*H + h_idx   (transpose(2,3).view, then j-major)
    a_2d = jnp.transpose(feature_A, (0, 3, 2, 1)).reshape(b, hw, c).astype(compute_dtype)
    # RHS (b, C, HW_B): i = h_idx*W + w_idx   (plain view)
    b_2d = feature_B.reshape(b, c, hw).astype(compute_dtype)

    # --- choose the HW_B lane tile under a generation-safe VMEM budget ---
    hw_lane = _round_up(hw, _LANE)
    if block_n is None:
        # Keep the double-buffered f32 output tile around <=12 MiB so the kernel
        # fits v5e's 16 MiB scoped default and v7x's 64 MiB physical VMEM with
        # headroom.  (v6e with 128 MiB VMEM could profitably use ~2x this.)
        budget = 12 * 1024 * 1024
        bn = max(_LANE, min(1024, budget // (2 * 4 * hw)))
        block_n = (bn // _LANE) * _LANE
    block_n = max(_LANE, _round_up(block_n, _LANE))
    block_n = min(block_n, hw_lane)
    hw_pad = _round_up(hw_lane, block_n)

    # Zero-pad HW_B for lane-dense (unmasked) stores.  Padded columns are
    # all-zero, never touch the (sublane-axis) norm, and are sliced off below.
    if hw_pad != hw:
        b_2d = jnp.pad(b_2d, ((0, 0), (0, 0), (0, hw_pad - hw)))

    in_bytes = jnp.dtype(compute_dtype).itemsize
    vmem_est = (2 * hw * block_n * 4            # double-buffered f32 output tile
                + 2 * c * block_n * in_bytes    # double-buffered feature_B tile
                + 2 * hw * c * in_bytes)        # resident feature_A block
    vmem_limit = int(max(vmem_est + (4 << 20), 32 << 20))

    cost = pl.CostEstimate(
        flops=2 * b * c * hw * hw_pad,
        transcendentals=b * hw_pad,             # one rsqrt per output column
        bytes_accessed=b * (hw * c * in_bytes + c * hw_pad * in_bytes
                            + hw * hw_pad * 4),
    )

    out = pl.pallas_call(
        _corr_kernel,
        out_shape=jax.ShapeDtypeStruct((b, hw, hw_pad), jnp.float32),
        grid_spec=pltpu.PrefetchScalarGridSpec(
            num_scalar_prefetch=0,
            grid=(b, hw_pad // block_n),
            in_specs=[
                # feature_A: constant block index over the column-tile axis ->
                # stays resident in VMEM across the inner grid dimension.
                pl.BlockSpec((1, hw, c), lambda bi, ni: (bi, 0, 0)),
                pl.BlockSpec((1, c, block_n), lambda bi, ni: (bi, 0, ni)),
            ],
            out_specs=pl.BlockSpec((1, hw, block_n), lambda bi, ni: (bi, 0, ni)),
        ),
        compiler_params=pltpu.CompilerParams(
            dimension_semantics=("parallel", "parallel"),
            vmem_limit_bytes=vmem_limit,
        ),
        cost_estimate=cost,
    )(a_2d, b_2d)                               # (b, HW_A, hw_pad)

    if hw_pad != hw:
        out = out[:, :, :hw]
    # Free reshape: column index i = h_B*W + w_B splits row-major into (H, W).
    return out.reshape(b, hw, h, w)


def _reference_forward(feature_A, feature_B):
    # Pure-JAX transliteration of the PyTorch forward (3D, normalization=True).
    b, c, h, w = feature_A.shape
    fa = jnp.transpose(feature_A, (0, 1, 3, 2)).reshape(b, c, h * w)
    fb = jnp.transpose(feature_B.reshape(b, c, h * w), (0, 2, 1))
    mul = jnp.einsum('bic,bcj->bij', fb, fa)
    corr = mul.reshape(b, h, w, h * w)
    corr = jnp.transpose(corr, (0, 1, 3, 2))   # transpose(2, 3)
    corr = jnp.transpose(corr, (0, 2, 1, 3))   # transpose(1, 2)
    corr = jnp.maximum(corr, 0.0)
    norm = jnp.sqrt(jnp.sum(corr * corr, axis=1, keepdims=True) + 1e-6)
    return corr / norm


if __name__ == "__main__":
    # FeatureCorrelation has no learnable parameters (only ReLU), so no weight init.
    key = jax.random.PRNGKey(0)
    k_a, k_b = jax.random.split(key)
    B, C, H, W = 2, 4, 16, 16
    feature_A = jax.random.normal(k_a, (B, C, H, W), dtype=jnp.float32)
    feature_B = jax.random.normal(k_b, (B, C, H, W), dtype=jnp.float32)

    ref = jax.block_until_ready(_reference_forward(feature_A, feature_B))

    # Exact f32 path (matches the PyTorch module's f32 semantics).
    out_f32 = jax.block_until_ready(
        feature_correlation_3d(feature_A, feature_B, compute_dtype=jnp.float32))
    assert out_f32.shape == (B, H * W, H, W), out_f32.shape
    assert jnp.allclose(out_f32, ref, atol=1e-4, rtol=1e-4), \
        float(jnp.max(jnp.abs(out_f32 - ref)))

    # Default fast path: bf16 MXU inputs with f32 accumulation.
    out = jax.block_until_ready(feature_correlation_3d(feature_A, feature_B))
    assert out.shape == (B, H * W, H, W), out.shape
    assert jnp.allclose(out, ref, atol=2e-2, rtol=2e-2), \
        float(jnp.max(jnp.abs(out - ref)))

    print("KERNEL_OK")
</pallas_src>

<mosaic_0001>
module attributes {stable_mosaic.version = 11 : i64} {
  func.func @_corr_kernel(%arg0: i32, %arg1: i32, %arg2: memref<1x256x4xf32, #tpu.memory_space<vmem>>, %arg3: memref<1x4x256xf32, #tpu.memory_space<vmem>>, %arg4: memref<1x256x256xf32, #tpu.memory_space<vmem>>) attributes {dimension_semantics = [#tpu.dimension_semantics<parallel>, #tpu.dimension_semantics<parallel>], iteration_bounds = array<i64: 2, 1>, scalar_prefetch = 0 : i64, scratch_operands = 0 : i64, tpu.core_type = #tpu.core_type<tc>, window_params = [{transform_indices = @transform_0, window_bounds = array<i64: 1, 256, 4>}, {transform_indices = @transform_1, window_bounds = array<i64: 1, 4, 256>}, {transform_indices = @transform_2, window_bounds = array<i64: 1, 256, 256>}]} {
    %c0 = arith.constant 0 : index
    %c0_0 = arith.constant 0 : index
    %c0_1 = arith.constant 0 : index
    %0 = vector.load %arg2[%c0, %c0_0, %c0_1] : memref<1x256x4xf32, #tpu.memory_space<vmem>>, vector<1x256x4xf32>
    %1 = vector.shape_cast %0 : vector<1x256x4xf32> to vector<256x4xf32>
    %c0_2 = arith.constant 0 : index
    %c0_3 = arith.constant 0 : index
    %c0_4 = arith.constant 0 : index
    %2 = vector.load %arg3[%c0_2, %c0_3, %c0_4] : memref<1x4x256xf32, #tpu.memory_space<vmem>>, vector<1x4x256xf32>
    %3 = vector.shape_cast %2 : vector<1x4x256xf32> to vector<4x256xf32>
    %cst = arith.constant dense<0.000000e+00> : vector<256x256xf32>
    %4 = tpu.matmul %1, %3, %cst {dimension_numbers = #tpu.dot_dimension_numbers<[1], [0], [0], [1], [0, 0, 1, 1], [], []>} : vector<256x4xf32>, vector<4x256xf32>, vector<256x256xf32> -> vector<256x256xf32>
    %cst_5 = arith.constant 0.000000e+00 : f32
    %5 = vector.broadcast %cst_5 : f32 to vector<256x256xf32>
    %6 = arith.maximumf %4, %5 : vector<256x256xf32>
    %7 = arith.mulf %6, %6 : vector<256x256xf32>
    %cst_6 = arith.constant dense<0.000000e+00> : vector<256xf32>
    %8 = vector.multi_reduction <add>, %7, %cst_6 [0] : vector<256x256xf32> to vector<256xf32>
    %9 = vector.shape_cast %8 : vector<256xf32> to vector<1x256xf32>
    %cst_7 = arith.constant 9.99999997E-7 : f32
    %10 = vector.broadcast %cst_7 : f32 to vector<1x256xf32>
    %11 = arith.addf %9, %10 : vector<1x256xf32>
    %12 = math.rsqrt %11 : vector<1x256xf32>
    %13 = vector.broadcast %12 : vector<1x256xf32> to vector<256x256xf32>
    %14 = arith.mulf %6, %13 : vector<256x256xf32>
    %c0_8 = arith.constant 0 : index
    %c0_9 = arith.constant 0 : index
    %c0_10 = arith.constant 0 : index
    %15 = vector.load %arg4[%c0_8, %c0_9, %c0_10] : memref<1x256x256xf32, #tpu.memory_space<vmem>>, vector<1x256x256xf32>
    %16 = vector.shape_cast %15 : vector<1x256x256xf32> to vector<256x256xf32>
    %17 = vector.shape_cast %14 : vector<256x256xf32> to vector<1x256x256xf32>
    tpu.vector_store %arg4[%c0_8, %c0_9, %c0_10], %17 {strides = array<i32>} : memref<1x256x256xf32, #tpu.memory_space<vmem>>, vector<1x256x256xf32>,
    return
  }
  func.func @transform_0(%arg0: i32, %arg1: i32) -> (i32, i32, i32) {
    %c0_i32 = arith.constant 0 : i32
    %c0_i32_0 = arith.constant 0 : i32
    %c0_i32_1 = arith.constant 0 : i32
    return %arg0, %c0_i32, %c0_i32_0 : i32, i32, i32
  }
  func.func @transform_1(%arg0: i32, %arg1: i32) -> (i32, i32, i32) {
    %c0_i32 = arith.constant 0 : i32
    %c0_i32_0 = arith.constant 0 : i32
    return %arg0, %c0_i32, %arg1 : i32, i32, i32
  }
  func.func @transform_2(%arg0: i32, %arg1: i32) -> (i32, i32, i32) {
    %c0_i32 = arith.constant 0 : i32
    %c0_i32_0 = arith.constant 0 : i32
    return %arg0, %c0_i32, %arg1 : i32, i32, i32
  }
}

</mosaic_0001>

<llo_original>
// kernel: tpu_custom_call.1
$region0: #{tpu_custom_call.1}
  #allocation0 [shape = 'u32[]', space=smem, size = 0x4, offset = 0x4, fixed_abs, tag = 'smem constant byte address 0x4 - core index']
  #allocation1 [shape = 'u32[144,128]{1,0:T(1,128)}', space=vmem, size = 0x12000, scoped, tag = 'internal scratch']
  %s0 = inlined_call_operand.vmem [shape: f32[2,256,4], index: 0, kind: input, shape index: {}]
  %s1 = inlined_call_operand.vmem [shape: f32[2,4,256], index: 1, kind: input, shape index: {}]
  %s2 = inlined_call_operand.hbm [shape: f32[2,256,256], index: 2, kind: output, shape index: {}]
  %s3 = sld [smem:[#allocation0]]
  $region41: #{tpu_custom_call.1} parent=0
    _
  %s5 = ssub.s32 1, %s3
  %s6 = scalar_select 0, %s5, %s3
  $region1: #{tpu_custom_call.1} parent=0
    #allocation2 [shape = 'u8[524288]{0}', space=vmem, size = 0x80000, scoped, tag = 'output window, operand 0']
    #allocation3 [shape = 's32[2]{0}', space=sflag, size = 0x8, scoped, tag = 'scoped memory for tpu_custom_call.1']
    %7 = vsyncpa [#allocation3], 0
    %s8 = scalar_lea.sflag [#allocation3], 1
    %9 = vsyncpa %s8, 0
    loop: start=0, step=1, limit=4
    $region2: #{tpu_custom_call.1} parent=1 // loop_pre_header
      _
    $region3: #{tpu_custom_call.1} parent=1 // loop_header
      %s11 = sphi 0, %s15
      %p12 = scmp.ge.s32.totalorder %s11, 4
      %s18 = sphi 0, %s30
      %s19 = sphi 0, %s26
      %s20 = sphi 0, %s18
      %s21 = sphi 0, %s19
      %s22 = sphi 0, %s20
      %s23 = sphi 0, %s21
      %s33 = sphi 0, %s35
      %s36 = sphi 0, %s33
      %s37 = sphi 0, %s36
      %s53 = sphi 0, %s37
      %s61 = sphi 0, %s63
      %s64 = sphi 0, %s61
      %s65 = sphi 0, %s64
      %s81 = sphi 0, %s65
      %s89 = sphi 0, %s91
      %s92 = sphi 0, %s89
      %s93 = sphi 0, %s92
      %s109 = sphi 0, %s93
    $region4: #{tpu_custom_call.1} parent=1 // loop_header_branch
      %14 = sbr.rel (%p12) target = $region8
    $region5: #{tpu_custom_call.1} parent=1 // loop_body
      %s16 = ssub.s32 %s11, 1
      %s17 = ssub.s32 %s11, 2
      %s24 = sadd.s32 1, %s19
      %p25 = scmp.ge.s32.totalorder %s24, 1
      %s26 = scalar_select %p25, 0, %s24
      %s27 = sadd.s32 1, %s18
      %s28 = scalar_select %p25, %s27, %s18
      %p29 = scmp.ge.s32.totalorder %s28, 2
      %s30 = scalar_select %p29, 0, %s28
      %s31 = ssub.s32 %s18, %s30
      %p32 = scmp.eq.s32.totalorder %s31, 0
      %s34 = sadd.s32 %s33, 1
      %s35 = scalar_select %p32, %s33, %s34
      %p38 = pneg %p32
      %p39 = scmp.eq.s32.totalorder %s11, 1
      %p40 = por %p38, %p39
      %p41 = scmp.ne.s32.totalorder %s33, %s36
      %p42 = scmp.eq.s32.totalorder %s11, 0
      %p43 = por %p41, %p42
      %p44 = scmp.ne.s32.totalorder %s33, %s36
      %p45 = scmp.eq.s32.totalorder %s16, 1
      %p46 = por %p44, %p45
      %p47 = scmp.ne.s32.totalorder %s36, %s37
      %p48 = scmp.eq.s32.totalorder %s16, 0
      %p49 = por %p47, %p48
      %p50 = scmp.ne.s32.totalorder %s36, %s37
      %p51 = scmp.eq.s32.totalorder %s17, 1
      %p52 = por %p50, %p51
      %p54 = scmp.ne.s32.totalorder %s37, %s53
      %p55 = scmp.eq.s32.totalorder %s17, 0
      %p56 = por %p54, %p55
      %s57 = ssub.s32 %s18, %s30
      %s58 = ssub.s32 %s19, %s26
      %s59 = sor.u32 %s57, %s58
      %p60 = scmp.eq.s32.totalorder %s59, 0
      %s62 = sadd.s32 %s61, 1
      %s63 = scalar_select %p60, %s61, %s62
      %p66 = pneg %p60
      %p67 = scmp.eq.s32.totalorder %s11, 1
      %p68 = por %p66, %p67
      %p69 = scmp.ne.s32.totalorder %s61, %s64
      %p70 = scmp.eq.s32.totalorder %s11, 0
      %p71 = por %p69, %p70
      %p72 = scmp.ne.s32.totalorder %s61, %s64
      %p73 = scmp.eq.s32.totalorder %s16, 1
      %p74 = por %p72, %p73
      %p75 = scmp.ne.s32.totalorder %s64, %s65
      %p76 = scmp.eq.s32.totalorder %s16, 0
      %p77 = por %p75, %p76
      %p78 = scmp.ne.s32.totalorder %s64, %s65
      %p79 = scmp.eq.s32.totalorder %s17, 1
      %p80 = por %p78, %p79
      %p82 = scmp.ne.s32.totalorder %s65, %s81
      %p83 = scmp.eq.s32.totalorder %s17, 0
      %p84 = por %p82, %p83
      %s85 = ssub.s32 %s18, %s30
      %s86 = ssub.s32 %s19, %s26
      %s87 = sor.u32 %s85, %s86
      %p88 = scmp.eq.s32.totalorder %s87, 0
      %s90 = sadd.s32 %s89, 1
      %s91 = scalar_select %p88, %s89, %s90
      %p94 = pneg %p88
      %p95 = scmp.eq.s32.totalorder %s11, 1
      %p96 = por %p94, %p95
      %p97 = scmp.ne.s32.totalorder %s89, %s92
      %p98 = scmp.eq.s32.totalorder %s11, 0
      %p99 = por %p97, %p98
      %p100 = scmp.ne.s32.totalorder %s89, %s92
      %p101 = scmp.eq.s32.totalorder %s16, 1
      %p102 = por %p100, %p101
      %p103 = scmp.ne.s32.totalorder %s92, %s93
      %p104 = scmp.eq.s32.totalorder %s16, 0
      %p105 = por %p103, %p104
      %p106 = scmp.ne.s32.totalorder %s92, %s93
      %p107 = scmp.eq.s32.totalorder %s17, 1
      %p108 = por %p106, %p107
      %p110 = scmp.ne.s32.totalorder %s93, %s109
      %p111 = scmp.eq.s32.totalorder %s17, 0
      %p112 = por %p110, %p111
      %p113 = scmp.le.s32.totalorder 1, %s11
      %p114 = scmp.lt.s32.totalorder %s11, 3
      %p115 = pnand %p113, %p114
      %p116 = pneg %p115
      // Predicated region
      $region9: #{tpu_custom_call.1} parent=5 // pred_check
        _
      $region10: #{tpu_custom_call.1} parent=5 // pred_check_branch
        %118 = sbr.rel (%p115) target = $region12
      $region11: #{tpu_custom_call.1} parent=5 // pred_region
        %s119 = ssub.s32 %s11, 1
      $region12: #{tpu_custom_call.1} parent=5 // pred_fallthru
        _
      %p120 = scmp.lt.s32.totalorder %s11, 2
      // Predicated region
      $region13: #{tpu_custom_call.1} parent=5 // pred_check
        %p121 = pneg %p120
      $region14: #{tpu_custom_call.1} parent=5 // pred_check_branch
        %123 = sbr.rel (%p121) target = $region16
      $region15: #{tpu_custom_call.1} parent=5 // pred_region
        // Predicated region
        $region17: #{tpu_custom_call.1} parent=15 // pred_check
          %p124 = pneg %p43
        $region18: #{tpu_custom_call.1} parent=15 // pred_check_branch
          %126 = sbr.rel (%p124) target = $region20
        $region19: #{tpu_custom_call.1} parent=15 // pred_region
          %p127 = scmp.lt.s32.totalorder %s18, 1
          %s128 = scalar_select %p127, %s18, 1
          %s129 = smul.addr %s128, 32
          %s130 = smul.addr %s129, 8
          %s131 = scalar_lea.vmem %s0, %s130
        $region20: #{tpu_custom_call.1} parent=15 // pred_fallthru
          _
        // Predicated region
        $region21: #{tpu_custom_call.1} parent=15 // pred_check
          %p132 = pneg %p71
        $region22: #{tpu_custom_call.1} parent=15 // pred_check_branch
          %134 = sbr.rel (%p132) target = $region24
        $region23: #{tpu_custom_call.1} parent=15 // pred_region
          %s135 = smul.u32 2, %s19
          %p136 = scmp.lt.s32.totalorder %s18, 1
          %s137 = scalar_select %p136, %s18, 1
          %p138 = scmp.lt.s32.totalorder %s135, 1
          %s139 = scalar_select %p138, %s135, 1
          %s140 = smul.addr %s137, 2
          %s141 = sadd.s32 %s139, %s140
          %s142 = smul.addr %s141, 4
          %s143 = scalar_lea.vmem %s1, %s142
          %s144 = smul.u32 2, %s19
        $region24: #{tpu_custom_call.1} parent=15 // pred_fallthru
          _
      $region16: #{tpu_custom_call.1} parent=5 // pred_fallthru
        _
      %p145 = scmp.le.s32.totalorder 1, %s11
      %p146 = scmp.lt.s32.totalorder %s11, 3
      %p147 = pnand %p145, %p146
      %p148 = pneg %p147
      // Predicated region
      $region25: #{tpu_custom_call.1} parent=5 // pred_check
        _
      $region26: #{tpu_custom_call.1} parent=5 // pred_check_branch
        %150 = sbr.rel (%p147) target = $region28
      $region27: #{tpu_custom_call.1} parent=5 // pred_region
        %s151 = ssub.s32 %s11, 1
        %p152 = scmp.lt.s32.totalorder %s20, 1
        %s153 = scalar_select %p152, %s20, 1
        %s154 = smul.addr %s153, 32
        %s155 = smul.addr %s154, 8
        %s156 = scalar_lea.vmem %s0, %s155
        %p157 = pneg %p49
        %p158 = pneg %p46
        %s159 = smul.u32 2, %s21
        %p160 = scmp.lt.s32.totalorder %s20, 1
        %s161 = scalar_select %p160, %s20, 1
        %p162 = scmp.lt.s32.totalorder %s159, 1
        %s163 = scalar_select %p162, %s159, 1
        %s164 = smul.addr %s161, 2
        %s165 = sadd.s32 %s163, %s164
        %s166 = smul.addr %s165, 4
        %s167 = scalar_lea.vmem %s1, %s166
        %p168 = pneg %p77
        %p169 = pneg %p74
        %p170 = pneg %p105
        %p171 = pneg %p102
        %s172 = sand.u32 %s92, 1
        %s173 = scalar_lea.sflag [#allocation3], %s172
        %s174 = sand.u32 %s92, 1
        %s175 = smul.addr %s174, 512
        %s176 = scalar_lea.vmem [#allocation2], %s175
        %p177 = scmp.lt.s32.totalorder %s20, 1
        %s178 = scalar_select %p177, %s20, 1
        %s179 = smul.addr %s178, 32
        %s180 = smul.addr %s179, 8
        %s181 = scalar_lea.vmem %s0, %s180
        %s182 = smul.u32 2, %s21
        %p183 = scmp.lt.s32.totalorder %s20, 1
        %s184 = scalar_select %p183, %s20, 1
        %p185 = scmp.lt.s32.totalorder %s182, 1
        %s186 = scalar_select %p185, %s182, 1
        %s187 = smul.addr %s184, 2
        %s188 = sadd.s32 %s186, %s187
        %s189 = smul.addr %s188, 4
        %s190 = scalar_lea.vmem %s1, %s189
        %s191 = smul.u32 2, %s21
        %s192 = smul.u32 2, %s21
        %v193 = vld [vmem:[%s181] sm:$0xff]
        %v194 = vld [vmem:[%s181 + $0x8] sm:$0xff]
        %v195 = vld [vmem:[%s181 + $0x10] sm:$0xff]
        %v196 = vld [vmem:[%s181 + $0x18] sm:$0xff]
        %v197 = vld [vmem:[%s181 + $0x20] sm:$0xff]
        %v198 = vld [vmem:[%s181 + $0x28] sm:$0xff]
        %v199 = vld [vmem:[%s181 + $0x30] sm:$0xff]
        %v200 = vld [vmem:[%s181 + $0x38] sm:$0xff]
        %v201 = vld [vmem:[%s181 + $0x40] sm:$0xff]
        %v202 = vld [vmem:[%s181 + $0x48] sm:$0xff]
        %v203 = vld [vmem:[%s181 + $0x50] sm:$0xff]
        %v204 = vld [vmem:[%s181 + $0x58] sm:$0xff]
        %v205 = vld [vmem:[%s181 + $0x60] sm:$0xff]
        %v206 = vld [vmem:[%s181 + $0x68] sm:$0xff]
        %v207 = vld [vmem:[%s181 + $0x70] sm:$0xff]
        %v208 = vld [vmem:[%s181 + $0x78] sm:$0xff]
        %v209 = vld [vmem:[%s181 + $0x80] sm:$0xff]
        %v210 = vld [vmem:[%s181 + $0x88] sm:$0xff]
        %v211 = vld [vmem:[%s181 + $0x90] sm:$0xff]
        %v212 = vld [vmem:[%s181 + $0x98] sm:$0xff]
        %v213 = vld [vmem:[%s181 + $0xa0] sm:$0xff]
        %v214 = vld [vmem:[%s181 + $0xa8] sm:$0xff]
        %v215 = vld [vmem:[%s181 + $0xb0] sm:$0xff]
        %v216 = vld [vmem:[%s181 + $0xb8] sm:$0xff]
        %v217 = vld [vmem:[%s181 + $0xc0] sm:$0xff]
        %v218 = vld [vmem:[%s181 + $0xc8] sm:$0xff]
        %v219 = vld [vmem:[%s181 + $0xd0] sm:$0xff]
        %v220 = vld [vmem:[%s181 + $0xd8] sm:$0xff]
        %v221 = vld [vmem:[%s181 + $0xe0] sm:$0xff]
        %v222 = vld [vmem:[%s181 + $0xe8] sm:$0xff]
        %v223 = vld [vmem:[%s181 + $0xf0] sm:$0xff]
        %v224 = vld [vmem:[%s181 + $0xf8] sm:$0xff]
        %v225 = vld [vmem:[%s190] sm:$0xff]
        %v227 = vcombine.high %v225, %v225
        %vm228 = vcmask 31744
        %v230 = vsel %vm228, %v193, 0
        %v233 = vsel %vm228, %v194, 0
        %v236 = vsel %vm228, %v195, 0
        %v239 = vsel %vm228, %v196, 0
        %v242 = vsel %vm228, %v197, 0
        %v245 = vsel %vm228, %v198, 0
        %v248 = vsel %vm228, %v199, 0
        %v251 = vsel %vm228, %v200, 0
        %v254 = vsel %vm228, %v201, 0
        %v257 = vsel %vm228, %v202, 0
        %v260 = vsel %vm228, %v203, 0
        %v263 = vsel %vm228, %v204, 0
        %v266 = vsel %vm228, %v205, 0
        %v269 = vsel %vm228, %v206, 0
        %v272 = vsel %vm228, %v207, 0
        %v275 = vsel %vm228, %v208, 0
        %v278 = vsel %vm228, %v209, 0
        %v281 = vsel %vm228, %v210, 0
        %v284 = vsel %vm228, %v211, 0
        %v287 = vsel %vm228, %v212, 0
        %v290 = vsel %vm228, %v213, 0
        %v293 = vsel %vm228, %v214, 0
        %v296 = vsel %vm228, %v215, 0
        %v299 = vsel %vm228, %v216, 0
        %v302 = vsel %vm228, %v217, 0
        %v305 = vsel %vm228, %v218, 0
        %v308 = vsel %vm228, %v219, 0
        %v311 = vsel %vm228, %v220, 0
        %v314 = vsel %vm228, %v221, 0
        %v317 = vsel %vm228, %v222, 0
        %v320 = vsel %vm228, %v223, 0
        %v323 = vsel %vm228, %v224, 0
        %vm325 = vcmask 1043456
        %v326 = vsel %vm325, %v225, 0
        %v328 = vsel %vm325, %v227, 0
        %330 = vmatprep.subr.mxu0 %v328
        %331 = vmatpush1.msra.mxu0 %v326
        %332 = vmatprep.subr.mxu0 0.0
        %333 = vmatpush1.msra.mxu0 0.0
        %334 = vmatprep.subr.mxu0 0.0
        %335 = vmatpush1.msra.mxu0 0.0
        %336 = vmatprep.subr.mxu0 0.0
        %337 = vmatpush1.msra.mxu0 0.0
        %338 = vmatprep.subr.mxu0 0.0
        %339 = vmatpush1.msra.mxu0 0.0
        %340 = vmatprep.subr.mxu0 0.0
        %341 = vmatpush1.msra.mxu0 0.0
        %342 = vmatprep.subr.mxu0 0.0
        %343 = vmatpush1.msra.mxu0 0.0
        %344 = vmatprep.subr.mxu0 0.0
        %345 = vmatpush1.msra.mxu0 0.0
        %346 = vmatprep.subr.mxu0 0.0
        %347 = vmatpush1.msra.mxu0 0.0
        %348 = vmatprep.subr.mxu0 0.0
        %349 = vmatpush1.msra.mxu0 0.0
        %350 = vmatprep.subr.mxu0 0.0
        %351 = vmatpush1.msra.mxu0 0.0
        %352 = vmatprep.subr.mxu0 0.0
        %353 = vmatpush1.msra.mxu0 0.0
        %354 = vmatprep.subr.mxu0 0.0
        %355 = vmatpush1.msra.mxu0 0.0
        %356 = vmatprep.subr.mxu0 0.0
        %357 = vmatpush1.msra.mxu0 0.0
        %358 = vmatprep.subr.mxu0 0.0
        %359 = vmatpush1.msra.mxu0 0.0
        %360 = vmatprep.subr.mxu0 0.0
        %361 = vmatpush1.msra.mxu0 0.0
        %362 = vmatprep.subr.mxu0 0.0
        %363 = vmatpush1.msra.mxu0 0.0
        %364 = vmatprep.subr.mxu0 0.0
        %365 = vmatpush1.msra.mxu0 0.0
        %366 = vmatprep.subr.mxu0 0.0
        %367 = vmatpush1.msra.mxu0 0.0
        %368 = vmatprep.subr.mxu0 0.0
        %369 = vmatpush1.msra.mxu0 0.0
        %370 = vmatprep.subr.mxu0 0.0
        %371 = vmatpush1.msra.mxu0 0.0
        %372 = vmatprep.subr.mxu0 0.0
        %373 = vmatpush1.msra.mxu0 0.0
        %374 = vmatprep.subr.mxu0 0.0
        %375 = vmatpush1.msra.mxu0 0.0
        %376 = vmatprep.subr.mxu0 0.0
        %377 = vmatpush1.msra.mxu0 0.0
        %378 = vmatprep.subr.mxu0 0.0
        %379 = vmatpush1.msra.mxu0 0.0
        %380 = vmatprep.subr.mxu0 0.0
        %381 = vmatpush1.msra.mxu0 0.0
        %382 = vmatprep.subr.mxu0 0.0
        %383 = vmatpush1.msra.mxu0 0.0
        %384 = vmatprep.subr.mxu0 0.0
        %385 = vmatpush1.msra.mxu0 0.0
        %386 = vmatprep.subr.mxu0 0.0
        %387 = vmatpush1.msra.mxu0 0.0
        %388 = vmatprep.subr.mxu0 0.0
        %389 = vmatpush1.msra.mxu0 0.0
        %390 = vmatprep.subr.mxu0 0.0
        %391 = vmatpush1.msra.mxu0 0.0
        %392 = vmatprep.subr.mxu0 0.0
        %393 = vmatpush1.msra.mxu0 0.0
        %394 = vmatprep.mubr.f32.mxu0 0.0
        %395 = vmatmul.mubr.f32.gmra.mrb[0].mxu0 %v230
        %v396 = vpop.f32.mrb[0].mxu0
        %v397 = vadd.f32 0.0, %v396
        %v398 = vpop.f32.mrb[0].mxu0
        %v399 = vadd.f32 0.0, %v398
        %400 = vmatprep.mubr.f32.mxu0 0.0
        %401 = vmatmul.mubr.f32.gmra.mrb[0].mxu0 %v233
        %v402 = vpop.f32.mrb[0].mxu0
        %v403 = vadd.f32 0.0, %v402
        %v404 = vpop.f32.mrb[0].mxu0
        %v405 = vadd.f32 0.0, %v404
        %406 = vmatprep.mubr.f32.mxu0 0.0
        %407 = vmatmul.mubr.f32.gmra.mrb[0].mxu0 %v236
        %v408 = vpop.f32.mrb[0].mxu0
        %v409 = vadd.f32 0.0, %v408
        %v410 = vpop.f32.mrb[0].mxu0
        %v411 = vadd.f32 0.0, %v410
        %412 = vmatprep.mubr.f32.mxu0 0.0
        %413 = vmatmul.mubr.f32.gmra.mrb[0].mxu0 %v239
        %v414 = vpop.f32.mrb[0].mxu0
        %v415 = vadd.f32 0.0, %v414
        %v416 = vpop.f32.mrb[0].mxu0
        %v417 = vadd.f32 0.0, %v416
        %418 = vmatprep.mubr.f32.mxu0 0.0
        %419 = vmatmul.mubr.f32.gmra.mrb[0].mxu0 %v242
        %v420 = vpop.f32.mrb[0].mxu0
        %v421 = vadd.f32 0.0, %v420
        %v422 = vpop.f32.mrb[0].mxu0
        %v423 = vadd.f32 0.0, %v422
        %424 = vmatprep.mubr.f32.mxu0 0.0
        %425 = vmatmul.mubr.f32.gmra.mrb[0].mxu0 %v245
        %v426 = vpop.f32.mrb[0].mxu0
        %v427 = vadd.f32 0.0, %v426
        %v428 = vpop.f32.mrb[0].mxu0
        %v429 = vadd.f32 0.0, %v428
        %430 = vmatprep.mubr.f32.mxu0 0.0
        %431 = vmatmul.mubr.f32.gmra.mrb[0].mxu0 %v248
        %v432 = vpop.f32.mrb[0].mxu0
        %v433 = vadd.f32 0.0, %v432
        %v434 = vpop.f32.mrb[0].mxu0
        %v435 = vadd.f32 0.0, %v434
        %436 = vmatprep.mubr.f32.mxu0 0.0
        %437 = vmatmul.mubr.f32.gmra.mrb[0].mxu0 %v251
        %v438 = vpop.f32.mrb[0].mxu0
        %v439 = vadd.f32 0.0, %v438
        %v440 = vpop.f32.mrb[0].mxu0
        %v441 = vadd.f32 0.0, %v440
        %442 = vmatprep.mubr.f32.mxu0 0.0
        %443 = vmatmul.mubr.f32.gmra.mrb[0].mxu0 %v254
        %v444 = vpop.f32.mrb[0].mxu0
        %v445 = vadd.f32 0.0, %v444
        %v446 = vpop.f32.mrb[0].mxu0
        %v447 = vadd.f32 0.0, %v446
        %448 = vmatprep.mubr.f32.mxu0 0.0
        %449 = vmatmul.mubr.f32.gmra.mrb[0].mxu0 %v257
        %v450 = vpop.f32.mrb[0].mxu0
        %v451 = vadd.f32 0.0, %v450
        %v452 = vpop.f32.mrb[0].mxu0
        %v453 = vadd.f32 0.0, %v452
        %454 = vmatprep.mubr.f32.mxu0 0.0
        %455 = vmatmul.mubr.f32.gmra.mrb[0].mxu0 %v260
        %v456 = vpop.f32.mrb[0].mxu0
        %v457 = vadd.f32 0.0, %v456
        %v458 = vpop.f32.mrb[0].mxu0
        %v459 = vadd.f32 0.0, %v458
        %460 = vmatprep.mubr.f32.mxu0 0.0
        %461 = vmatmul.mubr.f32.gmra.mrb[0].mxu0 %v263
        %v462 = vpop.f32.mrb[0].mxu0
        %v463 = vadd.f32 0.0, %v462
        %v464 = vpop.f32.mrb[0].mxu0
        %v465 = vadd.f32 0.0, %v464
        %466 = vmatprep.mubr.f32.mxu0 0.0
        %467 = vmatmul.mubr.f32.gmra.mrb[0].mxu0 %v266
        %v468 = vpop.f32.mrb[0].mxu0
        %v469 = vadd.f32 0.0, %v468
        %v470 = vpop.f32.mrb[0].mxu0
        %v471 = vadd.f32 0.0, %v470
        %472 = vmatprep.mubr.f32.mxu0 0.0
        %473 = vmatmul.mubr.f32.gmra.mrb[0].mxu0 %v269
        %v474 = vpop.f32.mrb[0].mxu0
        %v475 = vadd.f32 0.0, %v474
        %v476 = vpop.f32.mrb[0].mxu0
        %v477 = vadd.f32 0.0, %v476
        %478 = vmatprep.mubr.f32.mxu0 0.0
        %479 = vmatmul.mubr.f32.gmra.mrb[0].mxu0 %v272
        %v480 = vpop.f32.mrb[0].mxu0
        %v481 = vadd.f32 0.0, %v480
        %v482 = vpop.f32.mrb[0].mxu0
        %v483 = vadd.f32 0.0, %v482
        %484 = vmatprep.mubr.f32.mxu0 0.0
        %485 = vmatmul.mubr.f32.gmra.mrb[0].mxu0 %v275
        %v486 = vpop.f32.mrb[0].mxu0
        %v487 = vadd.f32 0.0, %v486
        %v488 = vpop.f32.mrb[0].mxu0
        %v489 = vadd.f32 0.0, %v488
        %490 = vmatprep.mubr.f32.mxu0 0.0
        %491 = vmatmul.mubr.f32.gmra.mrb[0].mxu0 %v278
        %v492 = vpop.f32.mrb[0].mxu0
        %v493 = vadd.f32 0.0, %v492
        %v494 = vpop.f32.mrb[0].mxu0
        %v495 = vadd.f32 0.0, %v494
        %496 = vmatprep.mubr.f32.mxu0 0.0
        %497 = vmatmul.mubr.f32.gmra.mrb[0].mxu0 %v281
        %v498 = vpop.f32.mrb[0].mxu0
        %v499 = vadd.f32 0.0, %v498
        %v500 = vpop.f32.mrb[0].mxu0
        %v501 = vadd.f32 0.0, %v500
        %502 = vmatprep.mubr.f32.mxu0 0.0
        %503 = vmatmul.mubr.f32.gmra.mrb[0].mxu0 %v284
        %v504 = vpop.f32.mrb[0].mxu0
        %v505 = vadd.f32 0.0, %v504
        %v506 = vpop.f32.mrb[0].mxu0
        %v507 = vadd.f32 0.0, %v506
        %508 = vmatprep.mubr.f32.mxu0 0.0
        %509 = vmatmul.mubr.f32.gmra.mrb[0].mxu0 %v287
        %v510 = vpop.f32.mrb[0].mxu0
        %v511 = vadd.f32 0.0, %v510
        %v512 = vpop.f32.mrb[0].mxu0
        %v513 = vadd.f32 0.0, %v512
        %514 = vmatprep.mubr.f32.mxu0 0.0
        %515 = vmatmul.mubr.f32.gmra.mrb[0].mxu0 %v290
        %v516 = vpop.f32.mrb[0].mxu0
        %v517 = vadd.f32 0.0, %v516
        %v518 = vpop.f32.mrb[0].mxu0
        %v519 = vadd.f32 0.0, %v518
        %520 = vmatprep.mubr.f32.mxu0 0.0
        %521 = vmatmul.mubr.f32.gmra.mrb[0].mxu0 %v293
        %v522 = vpop.f32.mrb[0].mxu0
        %v523 = vadd.f32 0.0, %v522
        %v524 = vpop.f32.mrb[0].mxu0
        %v525 = vadd.f32 0.0, %v524
        %526 = vmatprep.mubr.f32.mxu0 0.0
        %527 = vmatmul.mubr.f32.gmra.mrb[0].mxu0 %v296
        %v528 = vpop.f32.mrb[0].mxu0
        %v529 = vadd.f32 0.0, %v528
        %v530 = vpop.f32.mrb[0].mxu0
        %v531 = vadd.f32 0.0, %v530
        %532 = vmatprep.mubr.f32.mxu0 0.0
        %533 = vmatmul.mubr.f32.gmra.mrb[0].mxu0 %v299
        %v534 = vpop.f32.mrb[0].mxu0
        %v535 = vadd.f32 0.0, %v534
        %v536 = vpop.f32.mrb[0].mxu0
        %v537 = vadd.f32 0.0, %v536
        %538 = vmatprep.mubr.f32.mxu0 0.0
        %539 = vmatmul.mubr.f32.gmra.mrb[0].mxu0 %v302
        %v540 = vpop.f32.mrb[0].mxu0
        %v541 = vadd.f32 0.0, %v540
        %v542 = vpop.f32.mrb[0].mxu0
        %v543 = vadd.f32 0.0, %v542
        %544 = vmatprep.mubr.f32.mxu0 0.0
        %545 = vmatmul.mubr.f32.gmra.mrb[0].mxu0 %v305
        %v546 = vpop.f32.mrb[0].mxu0
        %v547 = vadd.f32 0.0, %v546
        %v548 = vpop.f32.mrb[0].mxu0
        %v549 = vadd.f32 0.0, %v548
        %550 = vmatprep.mubr.f32.mxu0 0.0
        %551 = vmatmul.mubr.f32.gmra.mrb[0].mxu0 %v308
        %v552 = vpop.f32.mrb[0].mxu0
        %v553 = vadd.f32 0.0, %v552
        %v554 = vpop.f32.mrb[0].mxu0
        %v555 = vadd.f32 0.0, %v554
        %556 = vmatprep.mubr.f32.mxu0 0.0
        %557 = vmatmul.mubr.f32.gmra.mrb[0].mxu0 %v311
        %v558 = vpop.f32.mrb[0].mxu0
        %v559 = vadd.f32 0.0, %v558
        %v560 = vpop.f32.mrb[0].mxu0
        %v561 = vadd.f32 0.0, %v560
        %562 = vmatprep.mubr.f32.mxu0 0.0
        %563 = vmatmul.mubr.f32.gmra.mrb[0].mxu0 %v314
        %v564 = vpop.f32.mrb[0].mxu0
        %v565 = vadd.f32 0.0, %v564
        %v566 = vpop.f32.mrb[0].mxu0
        %v567 = vadd.f32 0.0, %v566
        %568 = vmatprep.mubr.f32.mxu0 0.0
        %569 = vmatmul.mubr.f32.gmra.mrb[0].mxu0 %v317
        %v570 = vpop.f32.mrb[0].mxu0
        %v571 = vadd.f32 0.0, %v570
        %v572 = vpop.f32.mrb[0].mxu0
        %v573 = vadd.f32 0.0, %v572
        %574 = vmatprep.mubr.f32.mxu0 0.0
        %575 = vmatmul.mubr.f32.gmra.mrb[0].mxu0 %v320
        %v576 = vpop.f32.mrb[0].mxu0
        %v577 = vadd.f32 0.0, %v576
        %v578 = vpop.f32.mrb[0].mxu0
        %v579 = vadd.f32 0.0, %v578
        %580 = vmatprep.mubr.f32.mxu0 0.0
        %581 = vmatmul.mubr.f32.gmra.mrb[0].mxu0 %v323
        %v582 = vpop.f32.mrb[0].mxu0
        %v583 = vadd.f32 0.0, %v582
        %v584 = vpop.f32.mrb[0].mxu0
        %v585 = vadd.f32 0.0, %v584
        %586 = vdwg.mxu0
        %v587 = vmax.f32 %v397, 0.0
        %v588 = vmax.f32 %v399, 0.0
        %v589 = vmax.f32 %v403, 0.0
        %v590 = vmax.f32 %v405, 0.0
        %v591 = vmax.f32 %v409, 0.0
        %v592 = vmax.f32 %v411, 0.0
        %v593 = vmax.f32 %v415, 0.0
        %v594 = vmax.f32 %v417, 0.0
        %v595 = vmax.f32 %v421, 0.0
        %v596 = vmax.f32 %v423, 0.0
        %v597 = vmax.f32 %v427, 0.0
        %v598 = vmax.f32 %v429, 0.0
        %v599 = vmax.f32 %v433, 0.0
        %v600 = vmax.f32 %v435, 0.0
        %v601 = vmax.f32 %v439, 0.0
        %v602 = vmax.f32 %v441, 0.0
        %v603 = vmax.f32 %v445, 0.0
        %v604 = vmax.f32 %v447, 0.0
        %v605 = vmax.f32 %v451, 0.0
        %v606 = vmax.f32 %v453, 0.0
        %v607 = vmax.f32 %v457, 0.0
        %v608 = vmax.f32 %v459, 0.0
        %v609 = vmax.f32 %v463, 0.0
        %v610 = vmax.f32 %v465, 0.0
        %v611 = vmax.f32 %v469, 0.0
        %v612 = vmax.f32 %v471, 0.0
        %v613 = vmax.f32 %v475, 0.0
        %v614 = vmax.f32 %v477, 0.0
        %v615 = vmax.f32 %v481, 0.0
        %v616 = vmax.f32 %v483, 0.0
        %v617 = vmax.f32 %v487, 0.0
        %v618 = vmax.f32 %v489, 0.0
        %v619 = vmax.f32 %v493, 0.0
        %v620 = vmax.f32 %v495, 0.0
        %v621 = vmax.f32 %v499, 0.0
        %v622 = vmax.f32 %v501, 0.0
        %v623 = vmax.f32 %v505, 0.0
        %v624 = vmax.f32 %v507, 0.0
        %v625 = vmax.f32 %v511, 0.0
        %v626 = vmax.f32 %v513, 0.0
        %v627 = vmax.f32 %v517, 0.0
        %v628 = vmax.f32 %v519, 0.0
        %v629 = vmax.f32 %v523, 0.0
        %v630 = vmax.f32 %v525, 0.0
        %v631 = vmax.f32 %v529, 0.0
        %v632 = vmax.f32 %v531, 0.0
        %v633 = vmax.f32 %v535, 0.0
        %v634 = vmax.f32 %v537, 0.0
        %v635 = vmax.f32 %v541, 0.0
        %v636 = vmax.f32 %v543, 0.0
        %v637 = vmax.f32 %v547, 0.0
        %v638 = vmax.f32 %v549, 0.0
        %v639 = vmax.f32 %v553, 0.0
        %v640 = vmax.f32 %v555, 0.0
        %v641 = vmax.f32 %v559, 0.0
        %v642 = vmax.f32 %v561, 0.0
        %v643 = vmax.f32 %v565, 0.0
        %v644 = vmax.f32 %v567, 0.0
        %v645 = vmax.f32 %v571, 0.0
        %v646 = vmax.f32 %v573, 0.0
        %v647 = vmax.f32 %v577, 0.0
        %v648 = vmax.f32 %v579, 0.0
        %v649 = vmax.f32 %v583, 0.0
        %v650 = vmax.f32 %v585, 0.0
        %v651 = vmul.f32 %v587, %v587
        %v652 = vmul.f32 %v588, %v588
        %v653 = vmul.f32 %v589, %v589
        %v654 = vmul.f32 %v590, %v590
        %v655 = vmul.f32 %v591, %v591
        %v656 = vmul.f32 %v592, %v592
        %v657 = vmul.f32 %v593, %v593
        %v658 = vmul.f32 %v594, %v594
        %v659 = vmul.f32 %v595, %v595
        %v660 = vmul.f32 %v596, %v596
        %v661 = vmul.f32 %v597, %v597
        %v662 = vmul.f32 %v598, %v598
        %v663 = vmul.f32 %v599, %v599
        %v664 = vmul.f32 %v600, %v600
        %v665 = vmul.f32 %v601, %v601
        %v666 = vmul.f32 %v602, %v602
        %v667 = vmul.f32 %v603, %v603
        %v668 = vmul.f32 %v604, %v604
        %v669 = vmul.f32 %v605, %v605
        %v670 = vmul.f32 %v606, %v606
        %v671 = vmul.f32 %v607, %v607
        %v672 = vmul.f32 %v608, %v608
        %v673 = vmul.f32 %v609, %v609
        %v674 = vmul.f32 %v610, %v610
        %v675 = vmul.f32 %v611, %v611
        %v676 = vmul.f32 %v612, %v612
        %v677 = vmul.f32 %v613, %v613
        %v678 = vmul.f32 %v614, %v614
        %v679 = vmul.f32 %v615, %v615
        %v680 = vmul.f32 %v616, %v616
        %v681 = vmul.f32 %v617, %v617
        %v682 = vmul.f32 %v618, %v618
        %v683 = vmul.f32 %v619, %v619
        %v684 = vmul.f32 %v620, %v620
        %v685 = vmul.f32 %v621, %v621
        %v686 = vmul.f32 %v622, %v622
        %v687 = vmul.f32 %v623, %v623
        %v688 = vmul.f32 %v624, %v624
        %v689 = vmul.f32 %v625, %v625
        %v690 = vmul.f32 %v626, %v626
        %v691 = vmul.f32 %v627, %v627
        %v692 = vmul.f32 %v628, %v628
        %v693 = vmul.f32 %v629, %v629
        %v694 = vmul.f32 %v630, %v630
        %v695 = vmul.f32 %v631, %v631
        %v696 = vmul.f32 %v632, %v632
        %v697 = vmul.f32 %v633, %v633
        %v698 = vmul.f32 %v634, %v634
        %v699 = vmul.f32 %v635, %v635
        %v700 = vmul.f32 %v636, %v636
        %v701 = vmul.f32 %v637, %v637
        %v702 = vmul.f32 %v638, %v638
        %v703 = vmul.f32 %v639, %v639
        %v704 = vmul.f32 %v640, %v640
        %v705 = vmul.f32 %v641, %v641
        %v706 = vmul.f32 %v642, %v642
        %v707 = vmul.f32 %v643, %v643
        %v708 = vmul.f32 %v644, %v644
        %v709 = vmul.f32 %v645, %v645
        %v710 = vmul.f32 %v646, %v646
        %v711 = vmul.f32 %v647, %v647
        %v712 = vmul.f32 %v648, %v648
        %v713 = vmul.f32 %v649, %v649
        %v714 = vmul.f32 %v650, %v650
        %v715 = vadd.f32 %v651, %v653
        %v716 = vadd.f32 %v715, %v655
        %v717 = vadd.f32 %v716, %v657
        %v718 = vadd.f32 %v717, %v659
        %v719 = vadd.f32 %v718, %v661
        %v720 = vadd.f32 %v719, %v663
        %v721 = vadd.f32 %v720, %v665
        %v722 = vadd.f32 %v721, %v667
        %v723 = vadd.f32 %v722, %v669
        %v724 = vadd.f32 %v723, %v671
        %v725 = vadd.f32 %v724, %v673
        %v726 = vadd.f32 %v725, %v675
        %v727 = vadd.f32 %v726, %v677
        %v728 = vadd.f32 %v727, %v679
        %v729 = vadd.f32 %v728, %v681
        %v730 = vadd.f32 %v729, %v683
        %v731 = vadd.f32 %v730, %v685
        %v732 = vadd.f32 %v731, %v687
        %v733 = vadd.f32 %v732, %v689
        %v734 = vadd.f32 %v733, %v691
        %v735 = vadd.f32 %v734, %v693
        %v736 = vadd.f32 %v735, %v695
        %v737 = vadd.f32 %v736, %v697
        %v738 = vadd.f32 %v737, %v699
        %v739 = vadd.f32 %v738, %v701
        %v740 = vadd.f32 %v739, %v703
        %v741 = vadd.f32 %v740, %v705
        %v742 = vadd.f32 %v741, %v707
        %v743 = vadd.f32 %v742, %v709
        %v744 = vadd.f32 %v743, %v711
        %v745 = vadd.f32 %v744, %v713
        %v746 = vrot.slane %v745, 4
        %v747 = vadd.f32 %v745, %v746
        %v748 = vrot.slane %v747, 2
        %v749 = vadd.f32 %v747, %v748
        %v750 = vrot.slane %v749, 1
        %v751 = vadd.f32 %v749, %v750
        %v752 = vadd.f32 %v652, %v654
        %v753 = vadd.f32 %v752, %v656
        %v754 = vadd.f32 %v753, %v658
        %v755 = vadd.f32 %v754, %v660
        %v756 = vadd.f32 %v755, %v662
        %v757 = vadd.f32 %v756, %v664
        %v758 = vadd.f32 %v757, %v666
        %v759 = vadd.f32 %v758, %v668
        %v760 = vadd.f32 %v759, %v670
        %v761 = vadd.f32 %v760, %v672
        %v762 = vadd.f32 %v761, %v674
        %v763 = vadd.f32 %v762, %v676
        %v764 = vadd.f32 %v763, %v678
        %v765 = vadd.f32 %v764, %v680
        %v766 = vadd.f32 %v765, %v682
        %v767 = vadd.f32 %v766, %v684
        %v768 = vadd.f32 %v767, %v686
        %v769 = vadd.f32 %v768, %v688
        %v770 = vadd.f32 %v769, %v690
        %v771 = vadd.f32 %v770, %v692
        %v772 = vadd.f32 %v771, %v694
        %v773 = vadd.f32 %v772, %v696
        %v774 = vadd.f32 %v773, %v698
        %v775 = vadd.f32 %v774, %v700
        %v776 = vadd.f32 %v775, %v702
        %v777 = vadd.f32 %v776, %v704
        %v778 = vadd.f32 %v777, %v706
        %v779 = vadd.f32 %v778, %v708
        %v780 = vadd.f32 %v779, %v710
        %v781 = vadd.f32 %v780, %v712
        %v782 = vadd.f32 %v781, %v714
        %v783 = vrot.slane %v782, 4
        %v784 = vadd.f32 %v782, %v783
        %v785 = vrot.slane %v784, 2
        %v786 = vadd.f32 %v784, %v785
        %v787 = vrot.slane %v786, 1
        %v788 = vadd.f32 %v786, %v787
        %v789 = vadd.f32 %v751, 1e-06
        %v790 = vadd.f32 %v788, 1e-06
        %v791 = vrsqrt.pop %v789
        %v792 = vrsqrt.pop %v790
        %v793 = vmul.f32 %v587, %v791
        %v794 = vmul.f32 %v588, %v792
        %v795 = vmul.f32 %v589, %v791
        %v796 = vmul.f32 %v590, %v792
        %v797 = vmul.f32 %v591, %v791
        %v798 = vmul.f32 %v592, %v792
        %v799 = vmul.f32 %v593, %v791
        %v800 = vmul.f32 %v594, %v792
        %v801 = vmul.f32 %v595, %v791
        %v802 = vmul.f32 %v596, %v792
        %v803 = vmul.f32 %v597, %v791
        %v804 = vmul.f32 %v598, %v792
        %v805 = vmul.f32 %v599, %v791
        %v806 = vmul.f32 %v600, %v792
        %v807 = vmul.f32 %v601, %v791
        %v808 = vmul.f32 %v602, %v792
        %v809 = vmul.f32 %v603, %v791
        %v810 = vmul.f32 %v604, %v792
        %v811 = vmul.f32 %v605, %v791
        %v812 = vmul.f32 %v606, %v792
        %v813 = vmul.f32 %v607, %v791
        %v814 = vmul.f32 %v608, %v792
        %v815 = vmul.f32 %v609, %v791
        %v816 = vmul.f32 %v610, %v792
        %v817 = vmul.f32 %v611, %v791
        %v818 = vmul.f32 %v612, %v792
        %v819 = vmul.f32 %v613, %v791
        %v820 = vmul.f32 %v614, %v792
        %v821 = vmul.f32 %v615, %v791
        %v822 = vmul.f32 %v616, %v792
        %v823 = vmul.f32 %v617, %v791
        %v824 = vmul.f32 %v618, %v792
        %v825 = vmul.f32 %v619, %v791
        %v826 = vmul.f32 %v620, %v792
        %v827 = vmul.f32 %v621, %v791
        %v828 = vmul.f32 %v622, %v792
        %v829 = vmul.f32 %v623, %v791
        %v830 = vmul.f32 %v624, %v792
        %v831 = vmul.f32 %v625, %v791
        %v832 = vmul.f32 %v626, %v792
        %v833 = vmul.f32 %v627, %v791
        %v834 = vmul.f32 %v628, %v792
        %v835 = vmul.f32 %v629, %v791
        %v836 = vmul.f32 %v630, %v792
        %v837 = vmul.f32 %v631, %v791
        %v838 = vmul.f32 %v632, %v792
        %v839 = vmul.f32 %v633, %v791
        %v840 = vmul.f32 %v634, %v792
        %v841 = vmul.f32 %v635, %v791
        %v842 = vmul.f32 %v636, %v792
        %v843 = vmul.f32 %v637, %v791
        %v844 = vmul.f32 %v638, %v792
        %v845 = vmul.f32 %v639, %v791
        %v846 = vmul.f32 %v640, %v792
        %v847 = vmul.f32 %v641, %v791
        %v848 = vmul.f32 %v642, %v792
        %v849 = vmul.f32 %v643, %v791
        %v850 = vmul.f32 %v644, %v792
        %v851 = vmul.f32 %v645, %v791
        %v852 = vmul.f32 %v646, %v792
        %v853 = vmul.f32 %v647, %v791
        %v854 = vmul.f32 %v648, %v792
        %v855 = vmul.f32 %v649, %v791
        %v856 = vmul.f32 %v650, %v792
        %857 = vst [vmem:[%s176] sm:$0xff] %v793
        %858 = vst [vmem:[%s176 + $0x8] sm:$0xff] %v794
        %859 = vst [vmem:[%s176 + $0x10] sm:$0xff] %v795
        %860 = vst [vmem:[%s176 + $0x18] sm:$0xff] %v796
        %861 = vst [vmem:[%s176 + $0x20] sm:$0xff] %v797
        %862 = vst [vmem:[%s176 + $0x28] sm:$0xff] %v798
        %863 = vst [vmem:[%s176 + $0x30] sm:$0xff] %v799
        %864 = vst [vmem:[%s176 + $0x38] sm:$0xff] %v800
        %865 = vst [vmem:[%s176 + $0x40] sm:$0xff] %v801
        %866 = vst [vmem:[%s176 + $0x48] sm:$0xff] %v802
        %867 = vst [vmem:[%s176 + $0x50] sm:$0xff] %v803
        %868 = vst [vmem:[%s176 + $0x58] sm:$0xff] %v804
        %869 = vst [vmem:[%s176 + $0x60] sm:$0xff] %v805
        %870 = vst [vmem:[%s176 + $0x68] sm:$0xff] %v806
        %871 = vst [vmem:[%s176 + $0x70] sm:$0xff] %v807
        %872 = vst [vmem:[%s176 + $0x78] sm:$0xff] %v808
        %873 = vst [vmem:[%s176 + $0x80] sm:$0xff] %v809
        %874 = vst [vmem:[%s176 + $0x88] sm:$0xff] %v810
        %875 = vst [vmem:[%s176 + $0x90] sm:$0xff] %v811
        %876 = vst [vmem:[%s176 + $0x98] sm:$0xff] %v812
        %877 = vst [vmem:[%s176 + $0xa0] sm:$0xff] %v813
        %878 = vst [vmem:[%s176 + $0xa8] sm:$0xff] %v814
        %879 = vst [vmem:[%s176 + $0xb0] sm:$0xff] %v815
        %880 = vst [vmem:[%s176 + $0xb8] sm:$0xff] %v816
        %881 = vst [vmem:[%s176 + $0xc0] sm:$0xff] %v817
        %882 = vst [vmem:[%s176 + $0xc8] sm:$0xff] %v818
        %883 = vst [vmem:[%s176 + $0xd0] sm:$0xff] %v819
        %884 = vst [vmem:[%s176 + $0xd8] sm:$0xff] %v820
        %885 = vst [vmem:[%s176 + $0xe0] sm:$0xff] %v821
        %886 = vst [vmem:[%s176 + $0xe8] sm:$0xff] %v822
        %887 = vst [vmem:[%s176 + $0xf0] sm:$0xff] %v823
        %888 = vst [vmem:[%s176 + $0xf8] sm:$0xff] %v824
        %889 = vst [vmem:[%s176 + $0x100] sm:$0xff] %v825
        %890 = vst [vmem:[%s176 + $0x108] sm:$0xff] %v826
        %891 = vst [vmem:[%s176 + $0x110] sm:$0xff] %v827
        %892 = vst [vmem:[%s176 + $0x118] sm:$0xff] %v828
        %893 = vst [vmem:[%s176 + $0x120] sm:$0xff] %v829
        %894 = vst [vmem:[%s176 + $0x128] sm:$0xff] %v830
        %895 = vst [vmem:[%s176 + $0x130] sm:$0xff] %v831
        %896 = vst [vmem:[%s176 + $0x138] sm:$0xff] %v832
        %897 = vst [vmem:[%s176 + $0x140] sm:$0xff] %v833
        %898 = vst [vmem:[%s176 + $0x148] sm:$0xff] %v834
        %899 = vst [vmem:[%s176 + $0x150] sm:$0xff] %v835
        %900 = vst [vmem:[%s176 + $0x158] sm:$0xff] %v836
        %901 = vst [vmem:[%s176 + $0x160] sm:$0xff] %v837
        %902 = vst [vmem:[%s176 + $0x168] sm:$0xff] %v838
        %903 = vst [vmem:[%s176 + $0x170] sm:$0xff] %v839
        %904 = vst [vmem:[%s176 + $0x178] sm:$0xff] %v840
        %905 = vst [vmem:[%s176 + $0x180] sm:$0xff] %v841
        %906 = vst [vmem:[%s176 + $0x188] sm:$0xff] %v842
        %907 = vst [vmem:[%s176 + $0x190] sm:$0xff] %v843
        %908 = vst [vmem:[%s176 + $0x198] sm:$0xff] %v844
        %909 = vst [vmem:[%s176 + $0x1a0] sm:$0xff] %v845
        %910 = vst [vmem:[%s176 + $0x1a8] sm:$0xff] %v846
        %911 = vst [vmem:[%s176 + $0x1b0] sm:$0xff] %v847
        %912 = vst [vmem:[%s176 + $0x1b8] sm:$0xff] %v848
        %913 = vst [vmem:[%s176 + $0x1c0] sm:$0xff] %v849
        %914 = vst [vmem:[%s176 + $0x1c8] sm:$0xff] %v850
        %915 = vst [vmem:[%s176 + $0x1d0] sm:$0xff] %v851
        %916 = vst [vmem:[%s176 + $0x1d8] sm:$0xff] %v852
        %917 = vst [vmem:[%s176 + $0x1e0] sm:$0xff] %v853
        %918 = vst [vmem:[%s176 + $0x1e8] sm:$0xff] %v854
        %919 = vst [vmem:[%s176 + $0x1f0] sm:$0xff] %v855
        %920 = vst [vmem:[%s176 + $0x1f8] sm:$0xff] %v856
        %s921 = sand.u32 %s92, 1
        %s922 = scalar_lea.sflag [#allocation3], %s921
        %s923 = sand.u32 %s92, 1
        %s924 = smul.addr %s923, 512
        %s925 = scalar_lea.vmem [#allocation2], %s924
        // Predicated region
        $region29: #{tpu_custom_call.1} parent=27 // pred_check
          %p926 = pneg %p102
        $region30: #{tpu_custom_call.1} parent=27 // pred_check_branch
          %928 = sbr.rel (%p926) target = $region32
        $region31: #{tpu_custom_call.1} parent=27 // pred_region
          %s929 = smul.u32 2, %s21
          %s931 = ssub.s32 8192, 8192
          %932 = vsyncadd %s922, %s931
          %s933 = smul.addr %s20, 64
          %s934 = sadd.s32 %s929, %s933
          %s935 = smul.addr %s934, 128
          %s936 = scalar_lea.hbm %s2, %s935
          %s937 = sshll.u32 %s925, 4
          %s938 = int_to_ptr.vmem [resolvable:$true] %s937
          %943 = dma.vmem_to_hbm [thread:$0]  %s938, 8192, %s936, %s922, 256, 256, 16
        $region32: #{tpu_custom_call.1} parent=27 // pred_fallthru
          _
      $region28: #{tpu_custom_call.1} parent=5 // pred_fallthru
        _
      %p944 = scmp.le.s32.totalorder 2, %s11
      // Predicated region
      $region33: #{tpu_custom_call.1} parent=5 // pred_check
        %p945 = pneg %p944
      $region34: #{tpu_custom_call.1} parent=5 // pred_check_branch
        %947 = sbr.rel (%p945) target = $region36
      $region35: #{tpu_custom_call.1} parent=5 // pred_region
        %s948 = ssub.s32 %s11, 2
        // Predicated region
        $region37: #{tpu_custom_call.1} parent=35 // pred_check
          %p949 = pneg %p108
        $region38: #{tpu_custom_call.1} parent=35 // pred_check_branch
          %951 = sbr.rel (%p949) target = $region40
        $region39: #{tpu_custom_call.1} parent=35 // pred_region
          %s952 = sand.u32 %s93, 1
          %s953 = scalar_lea.sflag [#allocation3], %s952
          %s954 = sand.u32 %s93, 1
          %s955 = smul.addr %s954, 512
          %s956 = scalar_lea.vmem [#allocation2], %s955
          %957 = dma.done %s953, 8192
        $region40: #{tpu_custom_call.1} parent=35 // pred_fallthru
          _
      $region36: #{tpu_custom_call.1} parent=5 // pred_fallthru
        _
    $region6: #{tpu_custom_call.1} parent=1 // loop_footer
      %s15 = sadd.s32 1, %s11
    $region7: #{tpu_custom_call.1} parent=1 // loop_footer_branch
      %10 = sbr.rel target = $region3
    $region8: #{tpu_custom_call.1} parent=1 // loop_exit
      _
    %958 = vsyncpa [#allocation3], 1
    %s959 = scalar_lea.sflag [#allocation3], 1
    %960 = vsyncpa %s959, 1

</llo_original>
